<compile_context>
chip_gen: v5e
topology: v5e:2x2
jax: 0.10.0
libtpu: 0.0.40
codegen_flags: <defaults>
</compile_context>

<pallas_src>
import jax
import jax.numpy as jnp
from jax import lax
from jax.experimental import pallas as pl
from jax.experimental.pallas import tpu as pltpu


def _postprocess_kernel(ts_ref,            # SMEM scalar-prefetch [B, 2] = (img_h, img_w)
                        hoi_logits_ref,    # VMEM [b_tile, Q, NUM_HOI]
                        obj_logits_ref,    # VMEM [b_tile, Q, C]  (C = num_obj_classes + 1)
                        sub_boxes_ref,     # VMEM [b_tile, Q, 4]  cxcywh, normalized
                        obj_boxes_ref,     # VMEM [b_tile, Q, 4]
                        hoi_scores_ref,    # VMEM [b_tile, Q, NUM_HOI]
                        obj_scores_ref,    # VMEM [b_tile, Q, C]
                        obj_labels_ref,    # VMEM [b_tile, Q, 1] int32
                        boxes_ref):        # VMEM [b_tile, 2Q, 4] xyxy, absolute pixels
    b_tile, q, _ = sub_boxes_ref.shape
    b0 = pl.program_id(0) * b_tile         # first image index handled by this step

    def sigmoid(x):
        # Exact identity sigmoid(x) = 0.5*(tanh(x/2)+1): tanh is a single EUP op,
        # removing the VALU divide of 1/(1+exp(-x)) on the dominant score blocks.
        return 0.5 * (jnp.tanh(0.5 * x) + 1.0)

    # hoi_scores / obj_scores = logits.sigmoid()
    hoi_scores_ref[...] = sigmoid(hoi_logits_ref[...])
    obj_logits = obj_logits_ref[...]
    obj_scores_ref[...] = sigmoid(obj_logits)

    # obj_labels = softmax(obj_logits)[..., :-1].argmax(-1)
    #            == argmax(obj_logits[..., :-1])   (softmax is monotone per row)
    bt, qq, c = obj_logits.shape
    col = lax.broadcasted_iota(jnp.int32, (bt, qq, c), 2)
    valid = col < (c - 1)                               # drop trailing "no object" class
    masked = jnp.where(valid, obj_logits, -jnp.inf)
    row_max = jnp.max(masked, axis=-1, keepdims=True)   # [bt, Q, 1]
    is_max = jnp.logical_and(masked == row_max, valid)
    # first occurrence of the max (matches torch.max / jnp.argmax tie-breaking)
    obj_labels = jnp.min(jnp.where(is_max, col, c), axis=-1, keepdims=True)
    obj_labels_ref[...] = obj_labels.astype(jnp.int32)

    # scale_fct = [img_w, img_h, img_w, img_h] per image (scalar reads from SMEM)
    lane4 = lax.broadcasted_iota(jnp.int32, (1, 1, 4), 2)
    rows = []
    for i in range(b_tile):                              # static, small (<= 8)
        img_h = ts_ref[b0 + i, 0]
        img_w = ts_ref[b0 + i, 1]
        rows.append(jnp.where(lane4 % 2 == 0, img_w, img_h))   # [1, 1, 4]
    scale = rows[0] if b_tile == 1 else jnp.concatenate(rows, axis=0)  # [b_tile, 1, 4]

    def cxcywh_to_scaled_xyxy(bx):                       # [b_tile, Q, 4] -> same
        cxcy = bx[..., 0:2]
        half = 0.5 * bx[..., 2:4]
        xyxy = jnp.concatenate([cxcy - half, cxcy + half], axis=-1)
        return xyxy * scale

    # boxes = cat(sub_boxes, obj_boxes) along the query axis
    boxes_ref[:, 0:q, :] = cxcywh_to_scaled_xyxy(sub_boxes_ref[...])
    boxes_ref[:, q:, :] = cxcywh_to_scaled_xyxy(obj_boxes_ref[...])


def _pick_b_tile(batch, q, num_hoi, c, max_tile=8, vmem_budget=24 << 20):
    """Largest divisor of `batch` that keeps >=2 grid steps (when batch >= 2)
    and keeps double-buffered in+out blocks under the VMEM budget."""
    per_image_bytes = 4 * (q * (num_hoi + c + 4 + 4)              # input blocks
                           + q * num_hoi + q * c + q + 2 * q * 4)  # output blocks
    best = 1
    for d in range(1, min(batch, max_tile) + 1):
        if batch % d != 0:
            continue
        if batch > 1 and batch // d < 2:
            continue                       # keep >=2 steps so v7x's 2 TCs both get work
        if 2 * d * per_image_bytes > vmem_budget:
            continue                       # double-buffered blocks must fit VMEM
        best = d
    return best, per_image_bytes


def postprocess_hoi_triplet(pred_hoi_logits, pred_obj_logits,
                            pred_sub_boxes, pred_obj_boxes,
                            target_sizes, subject_category_id):
    B, Q, num_hoi = pred_hoi_logits.shape
    _, _, C = pred_obj_logits.shape
    assert target_sizes.shape == (B, 2)

    b_tile, per_image_bytes = _pick_b_tile(B, Q, num_hoi, C)
    n_steps = B // b_tile
    # Explicit scoped-VMEM budget, clamped to v7x's 64 MiB physical VMEM.
    vmem_limit = int(min(max(2 * b_tile * per_image_bytes + (4 << 20), 32 << 20),
                         64 << 20))

    img_map = lambda i, ts: (i, 0, 0)   # ts = scalar-prefetch ref (unused here)

    grid_spec = pltpu.PrefetchScalarGridSpec(
        num_scalar_prefetch=1,
        grid=(n_steps,),
        in_specs=[
            pl.BlockSpec((b_tile, Q, num_hoi), img_map),
            pl.BlockSpec((b_tile, Q, C), img_map),
            pl.BlockSpec((b_tile, Q, 4), img_map),
            pl.BlockSpec((b_tile, Q, 4), img_map),
        ],
        out_specs=(
            pl.BlockSpec((b_tile, Q, num_hoi), img_map),
            pl.BlockSpec((b_tile, Q, C), img_map),
            pl.BlockSpec((b_tile, Q, 1), img_map),
            pl.BlockSpec((b_tile, 2 * Q, 4), img_map),
        ),
    )
    out_shape = (
        jax.ShapeDtypeStruct((B, Q, num_hoi), jnp.float32),
        jax.ShapeDtypeStruct((B, Q, C), jnp.float32),
        jax.ShapeDtypeStruct((B, Q, 1), jnp.int32),
        jax.ShapeDtypeStruct((B, 2 * Q, 4), jnp.float32),
    )
    hoi_scores, obj_scores, obj_labels, boxes = pl.pallas_call(
        _postprocess_kernel,
        out_shape=out_shape,
        grid_spec=grid_spec,
        compiler_params=pltpu.CompilerParams(
            dimension_semantics=("parallel",),   # image tiles are independent
            vmem_limit_bytes=vmem_limit),
    )(target_sizes.astype(jnp.float32),
      pred_hoi_logits, pred_obj_logits, pred_sub_boxes, pred_obj_boxes)

    # labels = cat(full(subject_category_id, Q), obj_labels) — constant half is
    # built in the wrapper so the kernel never stores it.
    sub_labels = jnp.full((B, Q), int(subject_category_id), dtype=jnp.int32)
    labels = jnp.concatenate([sub_labels, obj_labels[..., 0]], axis=1)   # [B, 2Q]
    return hoi_scores, obj_scores, labels, boxes


def assemble_results(hoi_scores, obj_scores, labels, boxes):
    # Host-side bookkeeping of the original module (list of per-image dicts).
    B, two_q, _ = boxes.shape
    q = two_q // 2
    ids = jnp.arange(two_q, dtype=jnp.int32)
    results = []
    for i in range(B):
        results.append({
            'labels': labels[i],
            'boxes': boxes[i],
            'hoi_scores': hoi_scores[i],
            'obj_scores': obj_scores[i],
            'sub_ids': ids[:q],
            'obj_ids': ids[q:],
        })
    return results


def reference(pred_hoi_logits, pred_obj_logits, pred_sub_boxes, pred_obj_boxes,
              target_sizes, subject_category_id):
    hoi_scores = jax.nn.sigmoid(pred_hoi_logits)
    obj_scores = jax.nn.sigmoid(pred_obj_logits)
    obj_labels = jnp.argmax(jax.nn.softmax(pred_obj_logits, axis=-1)[..., :-1], axis=-1)

    img_h = target_sizes[:, 0]
    img_w = target_sizes[:, 1]
    scale_fct = jnp.stack([img_w, img_h, img_w, img_h], axis=1)   # [B, 4]

    def box_cxcywh_to_xyxy(x):
        cx, cy, w, h = x[..., 0], x[..., 1], x[..., 2], x[..., 3]
        return jnp.stack([cx - 0.5 * w, cy - 0.5 * h,
                          cx + 0.5 * w, cy + 0.5 * h], axis=-1)

    sub_boxes = box_cxcywh_to_xyxy(pred_sub_boxes) * scale_fct[:, None, :]
    obj_boxes = box_cxcywh_to_xyxy(pred_obj_boxes) * scale_fct[:, None, :]

    sub_labels = jnp.full_like(obj_labels, subject_category_id)
    labels = jnp.concatenate([sub_labels, obj_labels], axis=1).astype(jnp.int32)
    boxes = jnp.concatenate([sub_boxes, obj_boxes], axis=1)
    return hoi_scores, obj_scores, labels, boxes


if __name__ == "__main__":
    B, Q = 4, 16           # B=4 so the kernel runs with b_tile=2 and 2 grid steps
    NUM_HOI = 32           # HOI classes (600 in the real model)
    NUM_OBJ_P1 = 12        # object classes + trailing "no object" (81+1 in the real model)
    SUBJECT_CATEGORY_ID = 0

    key = jax.random.PRNGKey(0)
    k1, k2, k3, k4 = jax.random.split(key, 4)
    pred_hoi_logits = jax.random.normal(k1, (B, Q, NUM_HOI), dtype=jnp.float32)
    pred_obj_logits = jax.random.normal(k2, (B, Q, NUM_OBJ_P1), dtype=jnp.float32)
    # cxcywh boxes, normalized, positive width/height
    pred_sub_boxes = jax.random.uniform(k3, (B, Q, 4), dtype=jnp.float32,
                                        minval=0.1, maxval=0.4)
    pred_obj_boxes = jax.random.uniform(k4, (B, Q, 4), dtype=jnp.float32,
                                        minval=0.1, maxval=0.4)
    target_sizes = jnp.array([[480.0, 640.0], [512.0, 384.0],
                              [600.0, 800.0], [720.0, 960.0]], dtype=jnp.float32)

    out = postprocess_hoi_triplet(pred_hoi_logits, pred_obj_logits,
                                  pred_sub_boxes, pred_obj_boxes,
                                  target_sizes, SUBJECT_CATEGORY_ID)
    out = jax.block_until_ready(out)
    hoi_scores, obj_scores, labels, boxes = out

    r_hoi, r_obj, r_labels, r_boxes = reference(
        pred_hoi_logits, pred_obj_logits, pred_sub_boxes, pred_obj_boxes,
        target_sizes, SUBJECT_CATEGORY_ID)

    assert hoi_scores.shape == r_hoi.shape and hoi_scores.dtype == r_hoi.dtype
    assert jnp.allclose(hoi_scores, r_hoi, atol=1e-5, rtol=1e-5)
    assert obj_scores.shape == r_obj.shape
    assert jnp.allclose(obj_scores, r_obj, atol=1e-5, rtol=1e-5)
    assert labels.shape == r_labels.shape
    assert bool(jnp.all(labels == r_labels))
    assert boxes.shape == r_boxes.shape
    assert jnp.allclose(boxes, r_boxes, atol=1e-3, rtol=1e-5)

    results = assemble_results(hoi_scores, obj_scores, labels, boxes)
    assert len(results) == B and results[0]['boxes'].shape == (2 * Q, 4)
    assert results[0]['sub_ids'].shape == (Q,) and results[0]['obj_ids'].shape == (Q,)

    print("KERNEL_OK")
</pallas_src>

<mosaic_0001>
module attributes {stable_mosaic.version = 11 : i64} {
  func.func @_postprocess_kernel(%arg0: i32, %arg1: memref<4x2xf32, #tpu.memory_space<smem>>, %arg2: memref<2x16x32xf32, #tpu.memory_space<vmem>>, %arg3: memref<2x16x12xf32, #tpu.memory_space<vmem>>, %arg4: memref<2x16x4xf32, #tpu.memory_space<vmem>>, %arg5: memref<2x16x4xf32, #tpu.memory_space<vmem>>, %arg6: memref<2x16x32xf32, #tpu.memory_space<vmem>>, %arg7: memref<2x16x12xf32, #tpu.memory_space<vmem>>, %arg8: memref<2x16x1xi32, #tpu.memory_space<vmem>>, %arg9: memref<2x32x4xf32, #tpu.memory_space<vmem>>) attributes {dimension_semantics = [#tpu.dimension_semantics<parallel>], iteration_bounds = array<i64: 2>, scalar_prefetch = 1 : i64, scratch_operands = 0 : i64, tpu.core_type = #tpu.core_type<tc>, window_params = [{transform_indices = @transform_0, window_bounds = array<i64: 2, 16, 32>}, {transform_indices = @transform_1, window_bounds = array<i64: 2, 16, 12>}, {transform_indices = @transform_2, window_bounds = array<i64: 2, 16, 4>}, {transform_indices = @transform_3, window_bounds = array<i64: 2, 16, 4>}, {transform_indices = @transform_4, window_bounds = array<i64: 2, 16, 32>}, {transform_indices = @transform_5, window_bounds = array<i64: 2, 16, 12>}, {transform_indices = @transform_6, window_bounds = array<i64: 2, 16, 1>}, {transform_indices = @transform_7, window_bounds = array<i64: 2, 32, 4>}]} {
    %c2_i32 = arith.constant 2 : i32
    %0 = arith.muli %arg0, %c2_i32 : i32
    %c0 = arith.constant 0 : index
    %c0_0 = arith.constant 0 : index
    %c0_1 = arith.constant 0 : index
    %1 = vector.load %arg2[%c0, %c0_0, %c0_1] : memref<2x16x32xf32, #tpu.memory_space<vmem>>, vector<2x16x32xf32>
    %cst = arith.constant 5.000000e-01 : f32
    %2 = vector.broadcast %cst : f32 to vector<2x16x32xf32>
    %3 = arith.mulf %2, %1 : vector<2x16x32xf32>
    %4 = math.tanh %3 : vector<2x16x32xf32>
    %cst_2 = arith.constant 1.000000e+00 : f32
    %5 = vector.broadcast %cst_2 : f32 to vector<2x16x32xf32>
    %6 = arith.addf %4, %5 : vector<2x16x32xf32>
    %cst_3 = arith.constant 5.000000e-01 : f32
    %7 = vector.broadcast %cst_3 : f32 to vector<2x16x32xf32>
    %8 = arith.mulf %7, %6 : vector<2x16x32xf32>
    %c0_4 = arith.constant 0 : index
    %c0_5 = arith.constant 0 : index
    %c0_6 = arith.constant 0 : index
    %9 = vector.load %arg6[%c0_4, %c0_5, %c0_6] : memref<2x16x32xf32, #tpu.memory_space<vmem>>, vector<2x16x32xf32>
    tpu.vector_store %arg6[%c0_4, %c0_5, %c0_6], %8 {strides = array<i32>} : memref<2x16x32xf32, #tpu.memory_space<vmem>>, vector<2x16x32xf32>,
    %c0_7 = arith.constant 0 : index
    %c0_8 = arith.constant 0 : index
    %c0_9 = arith.constant 0 : index
    %10 = vector.load %arg3[%c0_7, %c0_8, %c0_9] : memref<2x16x12xf32, #tpu.memory_space<vmem>>, vector<2x16x12xf32>
    %cst_10 = arith.constant 5.000000e-01 : f32
    %11 = vector.broadcast %cst_10 : f32 to vector<2x16x12xf32>
    %12 = arith.mulf %11, %10 : vector<2x16x12xf32>
    %13 = math.tanh %12 : vector<2x16x12xf32>
    %cst_11 = arith.constant 1.000000e+00 : f32
    %14 = vector.broadcast %cst_11 : f32 to vector<2x16x12xf32>
    %15 = arith.addf %13, %14 : vector<2x16x12xf32>
    %cst_12 = arith.constant 5.000000e-01 : f32
    %16 = vector.broadcast %cst_12 : f32 to vector<2x16x12xf32>
    %17 = arith.mulf %16, %15 : vector<2x16x12xf32>
    %c0_13 = arith.constant 0 : index
    %c0_14 = arith.constant 0 : index
    %c0_15 = arith.constant 0 : index
    %18 = vector.load %arg7[%c0_13, %c0_14, %c0_15] : memref<2x16x12xf32, #tpu.memory_space<vmem>>, vector<2x16x12xf32>
    tpu.vector_store %arg7[%c0_13, %c0_14, %c0_15], %17 {strides = array<i32>} : memref<2x16x12xf32, #tpu.memory_space<vmem>>, vector<2x16x12xf32>,
    %19 = tpu.iota {dimensions = array<i32: 2>} : vector<2x16x12xi32>
    %c11_i32 = arith.constant 11 : i32
    %20 = vector.broadcast %c11_i32 : i32 to vector<2x16x12xi32>
    %21 = arith.cmpi slt, %19, %20 : vector<2x16x12xi32>
    %cst_16 = arith.constant 0xFF800000 : f32
    %22 = vector.broadcast %cst_16 : f32 to vector<2x16x12xf32>
    %23 = arith.select %21, %10, %22 : vector<2x16x12xi1>, vector<2x16x12xf32>
    %cst_17 = arith.constant dense<0xFF800000> : vector<2x16xf32>
    %24 = vector.multi_reduction <maximumf>, %23, %cst_17 [2] : vector<2x16x12xf32> to vector<2x16xf32>
    %25 = vector.shape_cast %24 : vector<2x16xf32> to vector<2x16x1xf32>
    %26 = vector.broadcast %25 : vector<2x16x1xf32> to vector<2x16x12xf32>
    %27 = arith.cmpf oeq, %23, %26 : vector<2x16x12xf32>
    %28 = arith.andi %27, %21 : vector<2x16x12xi1>
    %c12_i32 = arith.constant 12 : i32
    %29 = vector.broadcast %c12_i32 : i32 to vector<2x16x12xi32>
    %30 = arith.select %28, %19, %29 : vector<2x16x12xi1>, vector<2x16x12xi32>
    %cst_18 = arith.constant dense<2147483647> : vector<2x16xi32>
    %31 = vector.multi_reduction <minsi>, %30, %cst_18 [2] : vector<2x16x12xi32> to vector<2x16xi32>
    %32 = vector.shape_cast %31 : vector<2x16xi32> to vector<2x16x1xi32>
    %c0_19 = arith.constant 0 : index
    %c0_20 = arith.constant 0 : index
    %c0_21 = arith.constant 0 : index
    %33 = vector.load %arg8[%c0_19, %c0_20, %c0_21] : memref<2x16x1xi32, #tpu.memory_space<vmem>>, vector<2x16x1xi32>
    tpu.vector_store %arg8[%c0_19, %c0_20, %c0_21], %32 {strides = array<i32>} : memref<2x16x1xi32, #tpu.memory_space<vmem>>, vector<2x16x1xi32>,
    %34 = tpu.iota {dimensions = array<i32: 2>} : vector<1x1x4xi32>
    %c0_i32 = arith.constant 0 : i32
    %35 = arith.addi %0, %c0_i32 : i32
    %36 = arith.index_cast %35 : i32 to index
    %c0_22 = arith.constant 0 : index
    %37 = memref.load %arg1[%36, %c0_22] : memref<4x2xf32, #tpu.memory_space<smem>>
    %c0_i32_23 = arith.constant 0 : i32
    %38 = arith.addi %0, %c0_i32_23 : i32
    %39 = arith.index_cast %38 : i32 to index
    %c1 = arith.constant 1 : index
    %40 = memref.load %arg1[%39, %c1] : memref<4x2xf32, #tpu.memory_space<smem>>
    %c2_i32_24 = arith.constant 2 : i32
    %c0_i32_25 = arith.constant 0 : i32
    %41 = arith.cmpi eq, %c2_i32_24, %c0_i32_25 : i32
    %c1_i32 = arith.constant 1 : i32
    %42 = arith.select %41, %c1_i32, %c2_i32_24 : i32
    %43 = vector.broadcast %42 : i32 to vector<1x1x4xi32>
    %44 = arith.remsi %34, %43 : vector<1x1x4xi32>
    %c0_i32_26 = arith.constant 0 : i32
    %45 = vector.broadcast %c0_i32_26 : i32 to vector<1x1x4xi32>
    %46 = arith.cmpi ne, %44, %45 : vector<1x1x4xi32>
    %c0_i32_27 = arith.constant 0 : i32
    %47 = vector.broadcast %c0_i32_27 : i32 to vector<1x1x4xi32>
    %48 = arith.cmpi slt, %44, %47 : vector<1x1x4xi32>
    %c0_i32_28 = arith.constant 0 : i32
    %49 = arith.cmpi slt, %42, %c0_i32_28 : i32
    %50 = vector.broadcast %49 : i1 to vector<1x1x4xi1>
    %51 = vector.broadcast %50 : vector<1x1x4xi1> to vector<1x1x4xi1>
    %52 = arith.xori %48, %51 : vector<1x1x4xi1>
    %53 = arith.andi %52, %46 : vector<1x1x4xi1>
    %54 = vector.broadcast %42 : i32 to vector<1x1x4xi32>
    %55 = arith.addi %44, %54 : vector<1x1x4xi32>
    %56 = arith.select %53, %55, %44 : vector<1x1x4xi1>, vector<1x1x4xi32>
    %c0_i32_29 = arith.constant 0 : i32
    %57 = vector.broadcast %c0_i32_29 : i32 to vector<1x1x4xi32>
    %58 = arith.cmpi eq, %56, %57 : vector<1x1x4xi32>
    %59 = vector.broadcast %40 : f32 to vector<1x1x4xf32>
    %60 = vector.broadcast %37 : f32 to vector<1x1x4xf32>
    %61 = arith.select %58, %59, %60 : vector<1x1x4xi1>, vector<1x1x4xf32>
    %c1_i32_30 = arith.constant 1 : i32
    %62 = arith.addi %0, %c1_i32_30 : i32
    %63 = arith.index_cast %62 : i32 to index
    %c0_31 = arith.constant 0 : index
    %64 = memref.load %arg1[%63, %c0_31] : memref<4x2xf32, #tpu.memory_space<smem>>
    %c1_i32_32 = arith.constant 1 : i32
    %65 = arith.addi %0, %c1_i32_32 : i32
    %66 = arith.index_cast %65 : i32 to index
    %c1_33 = arith.constant 1 : index
    %67 = memref.load %arg1[%66, %c1_33] : memref<4x2xf32, #tpu.memory_space<smem>>
    %c2_i32_34 = arith.constant 2 : i32
    %c0_i32_35 = arith.constant 0 : i32
    %68 = arith.cmpi eq, %c2_i32_34, %c0_i32_35 : i32
    %c1_i32_36 = arith.constant 1 : i32
    %69 = arith.select %68, %c1_i32_36, %c2_i32_34 : i32
    %70 = vector.broadcast %69 : i32 to vector<1x1x4xi32>
    %71 = arith.remsi %34, %70 : vector<1x1x4xi32>
    %c0_i32_37 = arith.constant 0 : i32
    %72 = vector.broadcast %c0_i32_37 : i32 to vector<1x1x4xi32>
    %73 = arith.cmpi ne, %71, %72 : vector<1x1x4xi32>
    %c0_i32_38 = arith.constant 0 : i32
    %74 = vector.broadcast %c0_i32_38 : i32 to vector<1x1x4xi32>
    %75 = arith.cmpi slt, %71, %74 : vector<1x1x4xi32>
    %c0_i32_39 = arith.constant 0 : i32
    %76 = arith.cmpi slt, %69, %c0_i32_39 : i32
    %77 = vector.broadcast %76 : i1 to vector<1x1x4xi1>
    %78 = vector.broadcast %77 : vector<1x1x4xi1> to vector<1x1x4xi1>
    %79 = arith.xori %75, %78 : vector<1x1x4xi1>
    %80 = arith.andi %79, %73 : vector<1x1x4xi1>
    %81 = vector.broadcast %69 : i32 to vector<1x1x4xi32>
    %82 = arith.addi %71, %81 : vector<1x1x4xi32>
    %83 = arith.select %80, %82, %71 : vector<1x1x4xi1>, vector<1x1x4xi32>
    %c0_i32_40 = arith.constant 0 : i32
    %84 = vector.broadcast %c0_i32_40 : i32 to vector<1x1x4xi32>
    %85 = arith.cmpi eq, %83, %84 : vector<1x1x4xi32>
    %86 = vector.broadcast %67 : f32 to vector<1x1x4xf32>
    %87 = vector.broadcast %64 : f32 to vector<1x1x4xf32>
    %88 = arith.select %85, %86, %87 : vector<1x1x4xi1>, vector<1x1x4xf32>
    %89 = tpu.concatenate %61, %88 in 0 : vector<1x1x4xf32>, vector<1x1x4xf32> -> vector<2x1x4xf32>
    %c0_41 = arith.constant 0 : index
    %c0_42 = arith.constant 0 : index
    %c0_43 = arith.constant 0 : index
    %90 = vector.load %arg4[%c0_41, %c0_42, %c0_43] : memref<2x16x4xf32, #tpu.memory_space<vmem>>, vector<2x16x4xf32>
    %91 = vector.extract_strided_slice %90 {offsets = [0, 0, 0], sizes = [2, 16, 2], strides = [1, 1, 1]} : vector<2x16x4xf32> to vector<2x16x2xf32>
    %92 = vector.extract_strided_slice %90 {offsets = [0, 0, 2], sizes = [2, 16, 2], strides = [1, 1, 1]} : vector<2x16x4xf32> to vector<2x16x2xf32>
    %cst_44 = arith.constant 5.000000e-01 : f32
    %93 = vector.broadcast %cst_44 : f32 to vector<2x16x2xf32>
    %94 = arith.mulf %93, %92 : vector<2x16x2xf32>
    %95 = arith.subf %91, %94 : vector<2x16x2xf32>
    %96 = arith.addf %91, %94 : vector<2x16x2xf32>
    %97 = tpu.concatenate %95, %96 in 2 : vector<2x16x2xf32>, vector<2x16x2xf32> -> vector<2x16x4xf32>
    %98 = vector.broadcast %89 : vector<2x1x4xf32> to vector<2x16x4xf32>
    %99 = arith.mulf %97, %98 : vector<2x16x4xf32>
    %c0_45 = arith.constant 0 : index
    %c0_46 = arith.constant 0 : index
    %c0_47 = arith.constant 0 : index
    %100 = vector.load %arg9[%c0_45, %c0_46, %c0_47] : memref<2x32x4xf32, #tpu.memory_space<vmem>>, vector<2x16x4xf32>
    tpu.vector_store %arg9[%c0_45, %c0_46, %c0_47], %99 {strides = array<i32>} : memref<2x32x4xf32, #tpu.memory_space<vmem>>, vector<2x16x4xf32>,
    %c0_48 = arith.constant 0 : index
    %c0_49 = arith.constant 0 : index
    %c0_50 = arith.constant 0 : index
    %101 = vector.load %arg5[%c0_48, %c0_49, %c0_50] : memref<2x16x4xf32, #tpu.memory_space<vmem>>, vector<2x16x4xf32>
    %102 = vector.extract_strided_slice %101 {offsets = [0, 0, 0], sizes = [2, 16, 2], strides = [1, 1, 1]} : vector<2x16x4xf32> to vector<2x16x2xf32>
    %103 = vector.extract_strided_slice %101 {offsets = [0, 0, 2], sizes = [2, 16, 2], strides = [1, 1, 1]} : vector<2x16x4xf32> to vector<2x16x2xf32>
    %cst_51 = arith.constant 5.000000e-01 : f32
    %104 = vector.broadcast %cst_51 : f32 to vector<2x16x2xf32>
    %105 = arith.mulf %104, %103 : vector<2x16x2xf32>
    %106 = arith.subf %102, %105 : vector<2x16x2xf32>
    %107 = arith.addf %102, %105 : vector<2x16x2xf32>
    %108 = tpu.concatenate %106, %107 in 2 : vector<2x16x2xf32>, vector<2x16x2xf32> -> vector<2x16x4xf32>
    %109 = vector.broadcast %89 : vector<2x1x4xf32> to vector<2x16x4xf32>
    %110 = arith.mulf %108, %109 : vector<2x16x4xf32>
    %c0_52 = arith.constant 0 : index
    %c16 = arith.constant 16 : index
    %c0_53 = arith.constant 0 : index
    %111 = vector.load %arg9[%c0_52, %c16, %c0_53] : memref<2x32x4xf32, #tpu.memory_space<vmem>>, vector<2x16x4xf32>
    tpu.vector_store %arg9[%c0_52, %c16, %c0_53], %110 {strides = array<i32>} : memref<2x32x4xf32, #tpu.memory_space<vmem>>, vector<2x16x4xf32>,
    return
  }
  func.func @transform_0(%arg0: i32, %arg1: memref<4x2xf32, #tpu.memory_space<smem>>) -> (i32, i32, i32) {
    %c0_i32 = arith.constant 0 : i32
    %c0_i32_0 = arith.constant 0 : i32
    %c0_i32_1 = arith.constant 0 : i32
    return %arg0, %c0_i32, %c0_i32_0 : i32, i32, i32
  }
  func.func @transform_1(%arg0: i32, %arg1: memref<4x2xf32, #tpu.memory_space<smem>>) -> (i32, i32, i32) {
    %c0_i32 = arith.constant 0 : i32
    %c0_i32_0 = arith.constant 0 : i32
    %c0_i32_1 = arith.constant 0 : i32
    return %arg0, %c0_i32, %c0_i32_0 : i32, i32, i32
  }
  func.func @transform_2(%arg0: i32, %arg1: memref<4x2xf32, #tpu.memory_space<smem>>) -> (i32, i32, i32) {
    %c0_i32 = arith.constant 0 : i32
    %c0_i32_0 = arith.constant 0 : i32
    %c0_i32_1 = arith.constant 0 : i32
    return %arg0, %c0_i32, %c0_i32_0 : i32, i32, i32
  }
  func.func @transform_3(%arg0: i32, %arg1: memref<4x2xf32, #tpu.memory_space<smem>>) -> (i32, i32, i32) {
    %c0_i32 = arith.constant 0 : i32
    %c0_i32_0 = arith.constant 0 : i32
    %c0_i32_1 = arith.constant 0 : i32
    return %arg0, %c0_i32, %c0_i32_0 : i32, i32, i32
  }
  func.func @transform_4(%arg0: i32, %arg1: memref<4x2xf32, #tpu.memory_space<smem>>) -> (i32, i32, i32) {
    %c0_i32 = arith.constant 0 : i32
    %c0_i32_0 = arith.constant 0 : i32
    %c0_i32_1 = arith.constant 0 : i32
    return %arg0, %c0_i32, %c0_i32_0 : i32, i32, i32
  }
  func.func @transform_5(%arg0: i32, %arg1: memref<4x2xf32, #tpu.memory_space<smem>>) -> (i32, i32, i32) {
    %c0_i32 = arith.constant 0 : i32
    %c0_i32_0 = arith.constant 0 : i32
    %c0_i32_1 = arith.constant 0 : i32
    return %arg0, %c0_i32, %c0_i32_0 : i32, i32, i32
  }
  func.func @transform_6(%arg0: i32, %arg1: memref<4x2xf32, #tpu.memory_space<smem>>) -> (i32, i32, i32) {
    %c0_i32 = arith.constant 0 : i32
    %c0_i32_0 = arith.constant 0 : i32
    %c0_i32_1 = arith.constant 0 : i32
    return %arg0, %c0_i32, %c0_i32_0 : i32, i32, i32
  }
  func.func @transform_7(%arg0: i32, %arg1: memref<4x2xf32, #tpu.memory_space<smem>>) -> (i32, i32, i32) {
    %c0_i32 = arith.constant 0 : i32
    %c0_i32_0 = arith.constant 0 : i32
    %c0_i32_1 = arith.constant 0 : i32
    return %arg0, %c0_i32, %c0_i32_0 : i32, i32, i32
  }
}

</mosaic_0001>

<llo_original>
// kernel: tpu_custom_call.1
$region0: #{tpu_custom_call.1}
  #allocation0 [shape = 'u32[]', space=smem, size = 0x4, offset = 0x4, fixed_abs, tag = 'smem constant byte address 0x4 - core index']
  #allocation1 [shape = 'u32[72,128]{1,0:T(1,128)}', space=vmem, size = 0x9000, scoped, tag = 'internal scratch']
  #allocation2 [shape = 's32[1]{0}', space=sflag, size = 0x4, scoped, tag = 'scoped memory for tpu_custom_call.1']
  #allocation3 [shape = 'u8[2048]{0}', space=smem, size = 0x800, scoped, tag = 'prefetched SMEM operand 0']
  %s0 = inlined_call_operand.vmem [shape: f32[4,2], index: 0, kind: input, shape index: {}]
  %s1 = inlined_call_operand.vmem [shape: f32[4,16,32], index: 1, kind: input, shape index: {}]
  %s2 = inlined_call_operand.vmem [shape: f32[4,16,12], index: 2, kind: input, shape index: {}]
  %s3 = inlined_call_operand.vmem [shape: f32[4,16,4], index: 3, kind: input, shape index: {}]
  %s4 = inlined_call_operand.vmem [shape: f32[4,16,4], index: 4, kind: input, shape index: {}]
  %s5 = inlined_call_operand.hbm [shape: f32[4,16,32], index: 5, kind: output, shape index: {0}]
  %s6 = inlined_call_operand.vmem [shape: f32[4,16,12], index: 6, kind: output, shape index: {1}]
  %s7 = inlined_call_operand.vmem [shape: s32[4,16,1], index: 7, kind: output, shape index: {2}]
  %s8 = inlined_call_operand.vmem [shape: f32[4,32,4], index: 8, kind: output, shape index: {3}]
  %9 = xla_tuple %s5, %s6, %s7, %s8
  %s10 = sld [smem:[#allocation0]]
  $region73: #{tpu_custom_call.1} parent=0
    _
  %s12 = ssub.s32 1, %s10
  %s13 = scalar_select 0, %s12, %s10
  %s15 = sshll.u32 %s0, 4
  %s16 = int_to_ptr.vmem [resolvable:$true] %s15
  %18 = dma.vmem_to_smem %s16, 64, [#allocation3], [#allocation2]
  %20 = dma.done [#allocation2], 64
  %21 = sfence
  $region1: #{tpu_custom_call.1} parent=0
    #allocation4 [shape = 'u8[32768]{0}', space=vmem, size = 0x8000, scoped, tag = 'output window, operand 0']
    #allocation5 [shape = 's32[2]{0}', space=sflag, size = 0x8, scoped, tag = 'scoped memory for tpu_custom_call.1']
    %22 = vsyncpa [#allocation5], 0
    %s23 = scalar_lea.sflag [#allocation5], 1
    %24 = vsyncpa %s23, 0
    loop: start=0, step=1, limit=4
    $region2: #{tpu_custom_call.1} parent=1 // loop_pre_header
      _
    $region3: #{tpu_custom_call.1} parent=1 // loop_header
      %s26 = sphi 0, %s30
      %p27 = scmp.ge.s32.totalorder %s26, 4
      %s36 = sphi 0, %s38
      %s39 = sphi 0, %s36
      %s40 = sphi 0, %s39
      %s56 = sphi 0, %s40
      %s62 = sphi 0, %s64
      %s65 = sphi 0, %s62
      %s66 = sphi 0, %s65
      %s82 = sphi 0, %s66
      %s88 = sphi 0, %s90
      %s91 = sphi 0, %s88
      %s92 = sphi 0, %s91
      %s108 = sphi 0, %s92
      %s114 = sphi 0, %s116
      %s117 = sphi 0, %s114
      %s118 = sphi 0, %s117
      %s134 = sphi 0, %s118
      %s140 = sphi 0, %s142
      %s143 = sphi 0, %s140
      %s144 = sphi 0, %s143
      %s160 = sphi 0, %s144
      %s166 = sphi 0, %s168
      %s169 = sphi 0, %s166
      %s170 = sphi 0, %s169
      %s186 = sphi 0, %s170
      %s192 = sphi 0, %s194
      %s195 = sphi 0, %s192
      %s196 = sphi 0, %s195
      %s212 = sphi 0, %s196
      %s218 = sphi 0, %s220
      %s221 = sphi 0, %s218
      %s222 = sphi 0, %s221
      %s238 = sphi 0, %s222
    $region4: #{tpu_custom_call.1} parent=1 // loop_header_branch
      %29 = sbr.rel (%p27) target = $region8
    $region5: #{tpu_custom_call.1} parent=1 // loop_body
      %s31 = ssub.s32 %s26, 1
      %s32 = ssub.s32 %s26, 2
      %s33 = sadd.s32 %s26, 1
      %s34 = ssub.s32 %s26, %s33
      %p35 = scmp.eq.s32.totalorder %s34, 0
      %s37 = sadd.s32 %s36, 1
      %s38 = scalar_select %p35, %s36, %s37
      %p41 = pneg %p35
      %p42 = scmp.eq.s32.totalorder %s26, 1
      %p43 = por %p41, %p42
      %p44 = scmp.ne.s32.totalorder %s36, %s39
      %p45 = scmp.eq.s32.totalorder %s26, 0
      %p46 = por %p44, %p45
      %p47 = scmp.ne.s32.totalorder %s36, %s39
      %p48 = scmp.eq.s32.totalorder %s31, 1
      %p49 = por %p47, %p48
      %p50 = scmp.ne.s32.totalorder %s39, %s40
      %p51 = scmp.eq.s32.totalorder %s31, 0
      %p52 = por %p50, %p51
      %p53 = scmp.ne.s32.totalorder %s39, %s40
      %p54 = scmp.eq.s32.totalorder %s32, 1
      %p55 = por %p53, %p54
      %p57 = scmp.ne.s32.totalorder %s40, %s56
      %p58 = scmp.eq.s32.totalorder %s32, 0
      %p59 = por %p57, %p58
      %s60 = ssub.s32 %s26, %s33
      %p61 = scmp.eq.s32.totalorder %s60, 0
      %s63 = sadd.s32 %s62, 1
      %s64 = scalar_select %p61, %s62, %s63
      %p67 = pneg %p61
      %p68 = scmp.eq.s32.totalorder %s26, 1
      %p69 = por %p67, %p68
      %p70 = scmp.ne.s32.totalorder %s62, %s65
      %p71 = scmp.eq.s32.totalorder %s26, 0
      %p72 = por %p70, %p71
      %p73 = scmp.ne.s32.totalorder %s62, %s65
      %p74 = scmp.eq.s32.totalorder %s31, 1
      %p75 = por %p73, %p74
      %p76 = scmp.ne.s32.totalorder %s65, %s66
      %p77 = scmp.eq.s32.totalorder %s31, 0
      %p78 = por %p76, %p77
      %p79 = scmp.ne.s32.totalorder %s65, %s66
      %p80 = scmp.eq.s32.totalorder %s32, 1
      %p81 = por %p79, %p80
      %p83 = scmp.ne.s32.totalorder %s66, %s82
      %p84 = scmp.eq.s32.totalorder %s32, 0
      %p85 = por %p83, %p84
      %s86 = ssub.s32 %s26, %s33
      %p87 = scmp.eq.s32.totalorder %s86, 0
      %s89 = sadd.s32 %s88, 1
      %s90 = scalar_select %p87, %s88, %s89
      %p93 = pneg %p87
      %p94 = scmp.eq.s32.totalorder %s26, 1
      %p95 = por %p93, %p94
      %p96 = scmp.ne.s32.totalorder %s88, %s91
      %p97 = scmp.eq.s32.totalorder %s26, 0
      %p98 = por %p96, %p97
      %p99 = scmp.ne.s32.totalorder %s88, %s91
      %p100 = scmp.eq.s32.totalorder %s31, 1
      %p101 = por %p99, %p100
      %p102 = scmp.ne.s32.totalorder %s91, %s92
      %p103 = scmp.eq.s32.totalorder %s31, 0
      %p104 = por %p102, %p103
      %p105 = scmp.ne.s32.totalorder %s91, %s92
      %p106 = scmp.eq.s32.totalorder %s32, 1
      %p107 = por %p105, %p106
      %p109 = scmp.ne.s32.totalorder %s92, %s108
      %p110 = scmp.eq.s32.totalorder %s32, 0
      %p111 = por %p109, %p110
      %s112 = ssub.s32 %s26, %s33
      %p113 = scmp.eq.s32.totalorder %s112, 0
      %s115 = sadd.s32 %s114, 1
      %s116 = scalar_select %p113, %s114, %s115
      %p119 = pneg %p113
      %p120 = scmp.eq.s32.totalorder %s26, 1
      %p121 = por %p119, %p120
      %p122 = scmp.ne.s32.totalorder %s114, %s117
      %p123 = scmp.eq.s32.totalorder %s26, 0
      %p124 = por %p122, %p123
      %p125 = scmp.ne.s32.totalorder %s114, %s117
      %p126 = scmp.eq.s32.totalorder %s31, 1
      %p127 = por %p125, %p126
      %p128 = scmp.ne.s32.totalorder %s117, %s118
      %p129 = scmp.eq.s32.totalorder %s31, 0
      %p130 = por %p128, %p129
      %p131 = scmp.ne.s32.totalorder %s117, %s118
      %p132 = scmp.eq.s32.totalorder %s32, 1
      %p133 = por %p131, %p132
      %p135 = scmp.ne.s32.totalorder %s118, %s134
      %p136 = scmp.eq.s32.totalorder %s32, 0
      %p137 = por %p135, %p136
      %s138 = ssub.s32 %s26, %s33
      %p139 = scmp.eq.s32.totalorder %s138, 0
      %s141 = sadd.s32 %s140, 1
      %s142 = scalar_select %p139, %s140, %s141
      %p145 = pneg %p139
      %p146 = scmp.eq.s32.totalorder %s26, 1
      %p147 = por %p145, %p146
      %p148 = scmp.ne.s32.totalorder %s140, %s143
      %p149 = scmp.eq.s32.totalorder %s26, 0
      %p150 = por %p148, %p149
      %p151 = scmp.ne.s32.totalorder %s140, %s143
      %p152 = scmp.eq.s32.totalorder %s31, 1
      %p153 = por %p151, %p152
      %p154 = scmp.ne.s32.totalorder %s143, %s144
      %p155 = scmp.eq.s32.totalorder %s31, 0
      %p156 = por %p154, %p155
      %p157 = scmp.ne.s32.totalorder %s143, %s144
      %p158 = scmp.eq.s32.totalorder %s32, 1
      %p159 = por %p157, %p158
      %p161 = scmp.ne.s32.totalorder %s144, %s160
      %p162 = scmp.eq.s32.totalorder %s32, 0
      %p163 = por %p161, %p162
      %s164 = ssub.s32 %s26, %s33
      %p165 = scmp.eq.s32.totalorder %s164, 0
      %s167 = sadd.s32 %s166, 1
      %s168 = scalar_select %p165, %s166, %s167
      %p171 = pneg %p165
      %p172 = scmp.eq.s32.totalorder %s26, 1
      %p173 = por %p171, %p172
      %p174 = scmp.ne.s32.totalorder %s166, %s169
      %p175 = scmp.eq.s32.totalorder %s26, 0
      %p176 = por %p174, %p175
      %p177 = scmp.ne.s32.totalorder %s166, %s169
      %p178 = scmp.eq.s32.totalorder %s31, 1
      %p179 = por %p177, %p178
      %p180 = scmp.ne.s32.totalorder %s169, %s170
      %p181 = scmp.eq.s32.totalorder %s31, 0
      %p182 = por %p180, %p181
      %p183 = scmp.ne.s32.totalorder %s169, %s170
      %p184 = scmp.eq.s32.totalorder %s32, 1
      %p185 = por %p183, %p184
      %p187 = scmp.ne.s32.totalorder %s170, %s186
      %p188 = scmp.eq.s32.totalorder %s32, 0
      %p189 = por %p187, %p188
      %s190 = ssub.s32 %s26, %s33
      %p191 = scmp.eq.s32.totalorder %s190, 0
      %s193 = sadd.s32 %s192, 1
      %s194 = scalar_select %p191, %s192, %s193
      %p197 = pneg %p191
      %p198 = scmp.eq.s32.totalorder %s26, 1
      %p199 = por %p197, %p198
      %p200 = scmp.ne.s32.totalorder %s192, %s195
      %p201 = scmp.eq.s32.totalorder %s26, 0
      %p202 = por %p200, %p201
      %p203 = scmp.ne.s32.totalorder %s192, %s195
      %p204 = scmp.eq.s32.totalorder %s31, 1
      %p205 = por %p203, %p204
      %p206 = scmp.ne.s32.totalorder %s195, %s196
      %p207 = scmp.eq.s32.totalorder %s31, 0
      %p208 = por %p206, %p207
      %p209 = scmp.ne.s32.totalorder %s195, %s196
      %p210 = scmp.eq.s32.totalorder %s32, 1
      %p211 = por %p209, %p210
      %p213 = scmp.ne.s32.totalorder %s196, %s212
      %p214 = scmp.eq.s32.totalorder %s32, 0
      %p215 = por %p213, %p214
      %s216 = ssub.s32 %s26, %s33
      %p217 = scmp.eq.s32.totalorder %s216, 0
      %s219 = sadd.s32 %s218, 1
      %s220 = scalar_select %p217, %s218, %s219
      %p223 = pneg %p217
      %p224 = scmp.eq.s32.totalorder %s26, 1
      %p225 = por %p223, %p224
      %p226 = scmp.ne.s32.totalorder %s218, %s221
      %p227 = scmp.eq.s32.totalorder %s26, 0
      %p228 = por %p226, %p227
      %p229 = scmp.ne.s32.totalorder %s218, %s221
      %p230 = scmp.eq.s32.totalorder %s31, 1
      %p231 = por %p229, %p230
      %p232 = scmp.ne.s32.totalorder %s221, %s222
      %p233 = scmp.eq.s32.totalorder %s31, 0
      %p234 = por %p232, %p233
      %p235 = scmp.ne.s32.totalorder %s221, %s222
      %p236 = scmp.eq.s32.totalorder %s32, 1
      %p237 = por %p235, %p236
      %p239 = scmp.ne.s32.totalorder %s222, %s238
      %p240 = scmp.eq.s32.totalorder %s32, 0
      %p241 = por %p239, %p240
      %p242 = scmp.le.s32.totalorder 1, %s26
      %p243 = scmp.lt.s32.totalorder %s26, 3
      %p244 = pnand %p242, %p243
      %p245 = pneg %p244
      // Predicated region
      $region9: #{tpu_custom_call.1} parent=5 // pred_check
        _
      $region10: #{tpu_custom_call.1} parent=5 // pred_check_branch
        %247 = sbr.rel (%p244) target = $region12
      $region11: #{tpu_custom_call.1} parent=5 // pred_region
        %s248 = ssub.s32 %s26, 1
      $region12: #{tpu_custom_call.1} parent=5 // pred_fallthru
        _
      %p249 = scmp.lt.s32.totalorder %s26, 2
      // Predicated region
      $region13: #{tpu_custom_call.1} parent=5 // pred_check
        %p250 = pneg %p249
      $region14: #{tpu_custom_call.1} parent=5 // pred_check_branch
        %252 = sbr.rel (%p250) target = $region16
      $region15: #{tpu_custom_call.1} parent=5 // pred_region
        // Predicated region
        $region17: #{tpu_custom_call.1} parent=15 // pred_check
          %p253 = pneg %p46
        $region18: #{tpu_custom_call.1} parent=15 // pred_check_branch
          %255 = sbr.rel (%p253) target = $region20
        $region19: #{tpu_custom_call.1} parent=15 // pred_region
          %s256 = smul.u32 2, %s26
          %p257 = scmp.lt.s32.totalorder %s256, 3
          %s258 = scalar_select %p257, %s256, 3
          %s259 = smul.addr %s258, 2
          %s260 = smul.addr %s259, 8
          %s261 = scalar_lea.vmem %s1, %s260
          %s262 = smul.u32 2, %s26
        $region20: #{tpu_custom_call.1} parent=15 // pred_fallthru
          _
        // Predicated region
        $region21: #{tpu_custom_call.1} parent=15 // pred_check
          %p263 = pneg %p72
        $region22: #{tpu_custom_call.1} parent=15 // pred_check_branch
          %265 = sbr.rel (%p263) target = $region24
        $region23: #{tpu_custom_call.1} parent=15 // pred_region
          %s266 = smul.u32 2, %s26
          %p267 = scmp.lt.s32.totalorder %s266, 3
          %s268 = scalar_select %p267, %s266, 3
          %s269 = smul.addr %s268, 2
          %s270 = smul.addr %s269, 8
          %s271 = scalar_lea.vmem %s2, %s270
          %s272 = smul.u32 2, %s26
        $region24: #{tpu_custom_call.1} parent=15 // pred_fallthru
          _
        // Predicated region
        $region25: #{tpu_custom_call.1} parent=15 // pred_check
          %p273 = pneg %p98
        $region26: #{tpu_custom_call.1} parent=15 // pred_check_branch
          %275 = sbr.rel (%p273) target = $region28
        $region27: #{tpu_custom_call.1} parent=15 // pred_region
          %s276 = smul.u32 2, %s26
          %p277 = scmp.lt.s32.totalorder %s276, 3
          %s278 = scalar_select %p277, %s276, 3
          %s279 = smul.addr %s278, 2
          %s280 = smul.addr %s279, 8
          %s281 = scalar_lea.vmem %s3, %s280
          %s282 = smul.u32 2, %s26
        $region28: #{tpu_custom_call.1} parent=15 // pred_fallthru
          _
        // Predicated region
        $region29: #{tpu_custom_call.1} parent=15 // pred_check
          %p283 = pneg %p124
        $region30: #{tpu_custom_call.1} parent=15 // pred_check_branch
          %285 = sbr.rel (%p283) target = $region32
        $region31: #{tpu_custom_call.1} parent=15 // pred_region
          %s286 = smul.u32 2, %s26
          %p287 = scmp.lt.s32.totalorder %s286, 3
          %s288 = scalar_select %p287, %s286, 3
          %s289 = smul.addr %s288, 2
          %s290 = smul.addr %s289, 8
          %s291 = scalar_lea.vmem %s4, %s290
          %s292 = smul.u32 2, %s26
        $region32: #{tpu_custom_call.1} parent=15 // pred_fallthru
          _
      $region16: #{tpu_custom_call.1} parent=5 // pred_fallthru
        _
      %p293 = scmp.le.s32.totalorder 1, %s26
      %p294 = scmp.lt.s32.totalorder %s26, 3
      %p295 = pnand %p293, %p294
      %p296 = pneg %p295
      // Predicated region
      $region33: #{tpu_custom_call.1} parent=5 // pred_check
        _
      $region34: #{tpu_custom_call.1} parent=5 // pred_check_branch
        %298 = sbr.rel (%p295) target = $region36
      $region35: #{tpu_custom_call.1} parent=5 // pred_region
        %s299 = ssub.s32 %s26, 1
        %s300 = smul.u32 2, %s31
        %p301 = scmp.lt.s32.totalorder %s300, 3
        %s302 = scalar_select %p301, %s300, 3
        %s303 = smul.addr %s302, 2
        %s304 = smul.addr %s303, 8
        %s305 = scalar_lea.vmem %s1, %s304
        %p306 = pneg %p52
        %p307 = pneg %p49
        %s308 = smul.u32 2, %s31
        %p309 = scmp.lt.s32.totalorder %s308, 3
        %s310 = scalar_select %p309, %s308, 3
        %s311 = smul.addr %s310, 2
        %s312 = smul.addr %s311, 8
        %s313 = scalar_lea.vmem %s2, %s312
        %p314 = pneg %p78
        %p315 = pneg %p75
        %s316 = smul.u32 2, %s31
        %p317 = scmp.lt.s32.totalorder %s316, 3
        %s318 = scalar_select %p317, %s316, 3
        %s319 = smul.addr %s318, 2
        %s320 = smul.addr %s319, 8
        %s321 = scalar_lea.vmem %s3, %s320
        %p322 = pneg %p104
        %p323 = pneg %p101
        %s324 = smul.u32 2, %s31
        %p325 = scmp.lt.s32.totalorder %s324, 3
        %s326 = scalar_select %p325, %s324, 3
        %s327 = smul.addr %s326, 2
        %s328 = smul.addr %s327, 8
        %s329 = scalar_lea.vmem %s4, %s328
        %p330 = pneg %p130
        %p331 = pneg %p127
        %p332 = pneg %p156
        %p333 = pneg %p153
        %s334 = sand.u32 %s143, 1
        %s335 = scalar_lea.sflag [#allocation5], %s334
        %s336 = sand.u32 %s143, 1
        %s337 = smul.addr %s336, 32
        %s338 = scalar_lea.vmem [#allocation4], %s337
        %p339 = pneg %p182
        %p340 = pneg %p179
        %s341 = smul.u32 2, %s31
        %p342 = scmp.lt.s32.totalorder %s341, 3
        %s343 = scalar_select %p342, %s341, 3
        %s344 = smul.addr %s343, 2
        %s345 = smul.addr %s344, 8
        %s346 = scalar_lea.vmem %s6, %s345
        %p347 = pneg %p208
        %p348 = pneg %p205
        %s349 = smul.u32 2, %s31
        %p350 = scmp.lt.s32.totalorder %s349, 3
        %s351 = scalar_select %p350, %s349, 3
        %s352 = smul.addr %s351, 2
        %s353 = smul.addr %s352, 8
        %s354 = scalar_lea.vmem %s7, %s353
        %p355 = pneg %p234
        %p356 = pneg %p231
        %s357 = smul.u32 2, %s31
        %p358 = scmp.lt.s32.totalorder %s357, 3
        %s359 = scalar_select %p358, %s357, 3
        %s360 = smul.addr %s359, 4
        %s361 = smul.addr %s360, 8
        %s362 = scalar_lea.vmem %s8, %s361
        %s363 = smul.u32 2, %s31
        %p364 = scmp.lt.s32.totalorder %s363, 3
        %s365 = scalar_select %p364, %s363, 3
        %s366 = smul.addr %s365, 2
        %s367 = smul.addr %s366, 8
        %s368 = scalar_lea.vmem %s1, %s367
        %s369 = smul.u32 2, %s31
        %s370 = smul.u32 2, %s31
        %p371 = scmp.lt.s32.totalorder %s370, 3
        %s372 = scalar_select %p371, %s370, 3
        %s373 = smul.addr %s372, 2
        %s374 = smul.addr %s373, 8
        %s375 = scalar_lea.vmem %s2, %s374
        %s376 = smul.u32 2, %s31
        %s377 = smul.u32 2, %s31
        %p378 = scmp.lt.s32.totalorder %s377, 3
        %s379 = scalar_select %p378, %s377, 3
        %s380 = smul.addr %s379, 2
        %s381 = smul.addr %s380, 8
        %s382 = scalar_lea.vmem %s3, %s381
        %s383 = smul.u32 2, %s31
        %s384 = smul.u32 2, %s31
        %p385 = scmp.lt.s32.totalorder %s384, 3
        %s386 = scalar_select %p385, %s384, 3
        %s387 = smul.addr %s386, 2
        %s388 = smul.addr %s387, 8
        %s389 = scalar_lea.vmem %s4, %s388
        %s390 = smul.u32 2, %s31
        %s391 = smul.u32 2, %s31
        %s392 = smul.u32 2, %s31
        %p393 = scmp.lt.s32.totalorder %s392, 3
        %s394 = scalar_select %p393, %s392, 3
        %s395 = smul.addr %s394, 2
        %s396 = smul.addr %s395, 8
        %s397 = scalar_lea.vmem %s6, %s396
        %s398 = smul.u32 2, %s31
        %s399 = smul.u32 2, %s31
        %p400 = scmp.lt.s32.totalorder %s399, 3
        %s401 = scalar_select %p400, %s399, 3
        %s402 = smul.addr %s401, 2
        %s403 = smul.addr %s402, 8
        %s404 = scalar_lea.vmem %s7, %s403
        %s405 = smul.u32 2, %s31
        %s406 = smul.u32 2, %s31
        %p407 = scmp.lt.s32.totalorder %s406, 3
        %s408 = scalar_select %p407, %s406, 3
        %s409 = smul.addr %s408, 4
        %s410 = smul.addr %s409, 8
        %s411 = scalar_lea.vmem %s8, %s410
        %s412 = smul.u32 2, %s31
        %s413 = smul.u32 %s31, 2
        %v414 = vld [vmem:[%s368] sm:$0xff]
        %v415 = vld [vmem:[%s368 + $0x8] sm:$0xff]
        %v416 = vld [vmem:[%s368 + $0x10] sm:$0xff]
        %v417 = vld [vmem:[%s368 + $0x18] sm:$0xff]
        %v418 = vmul.f32 %v414, 0.5
        %v419 = vmul.f32 %v415, 0.5
        %v420 = vmul.f32 %v416, 0.5
        %v421 = vmul.f32 %v417, 0.5
        %v422 = vtanh.pop %v418
        %v423 = vtanh.pop %v419
        %v424 = vtanh.pop %v420
        %v425 = vtanh.pop %v421
        %v426 = vadd.f32 %v422, 1.0
        %v427 = vadd.f32 %v423, 1.0
        %v428 = vadd.f32 %v424, 1.0
        %v429 = vadd.f32 %v425, 1.0
        %v430 = vmul.f32 %v426, 0.5
        %v431 = vmul.f32 %v427, 0.5
        %v432 = vmul.f32 %v428, 0.5
        %v433 = vmul.f32 %v429, 0.5
        %vm434 = vcmask 261120
        %435 = vst.msk [vmem:[%s338] sm:$0xff] %vm434, %v430
        %436 = vst.msk [vmem:[%s338 + $0x8] sm:$0xff] %vm434, %v431
        %437 = vst.msk [vmem:[%s338 + $0x10] sm:$0xff] %vm434, %v432
        %438 = vst.msk [vmem:[%s338 + $0x18] sm:$0xff] %vm434, %v433
        %v439 = vld [vmem:[%s375] sm:$0xff]
        %v440 = vld [vmem:[%s375 + $0x8] sm:$0xff]
        %v441 = vld [vmem:[%s375 + $0x10] sm:$0xff]
        %v442 = vld [vmem:[%s375 + $0x18] sm:$0xff]
        %v443 = vmul.f32 %v439, 0.5
        %v444 = vmul.f32 %v440, 0.5
        %v445 = vmul.f32 %v441, 0.5
        %v446 = vmul.f32 %v442, 0.5
        %v447 = vtanh.pop %v443
        %v448 = vtanh.pop %v444
        %v449 = vtanh.pop %v445
        %v450 = vtanh.pop %v446
        %v451 = vadd.f32 %v447, 1.0
        %v452 = vadd.f32 %v448, 1.0
        %v453 = vadd.f32 %v449, 1.0
        %v454 = vadd.f32 %v450, 1.0
        %v455 = vmul.f32 %v451, 0.5
        %v456 = vmul.f32 %v452, 0.5
        %v457 = vmul.f32 %v453, 0.5
        %v458 = vmul.f32 %v454, 0.5
        %vm459 = vcmask 97280
        %460 = vst.msk [vmem:[%s397] sm:$0xff] %vm459, %v455
        %461 = vst.msk [vmem:[%s397 + $0x8] sm:$0xff] %vm459, %v456
        %462 = vst.msk [vmem:[%s397 + $0x10] sm:$0xff] %vm459, %v457
        %463 = vst.msk [vmem:[%s397 + $0x18] sm:$0xff] %vm459, %v458
        %v464 = vlaneseq
        %v465 = vand.u32 %v464, 127
        %vm466 = vcmp.lt.s32.totalorder %v465, 11
        %v467 = vsel %vm466, %v439, -inf
        %v468 = vsel %vm466, %v440, -inf
        %v469 = vsel %vm466, %v441, -inf
        %v470 = vsel %vm466, %v442, -inf
        %v471 = vsel %vm459, %v467, -inf
        %472 = vmax.xlane.f32.xlu0 %v471
        %v473 = vpop.xlane.xlu0 %472
        %v474 = vsel %vm459, %v468, -inf
        %475 = vmax.xlane.f32.xlu0 %v474
        %v476 = vpop.xlane.xlu0 %475
        %v477 = vsel %vm459, %v469, -inf
        %478 = vmax.xlane.f32.xlu0 %v477
        %v479 = vpop.xlane.xlu0 %478
        %v480 = vsel %vm459, %v470, -inf
        %481 = vmax.xlane.f32.xlu0 %v480
        %v482 = vpop.xlane.xlu0 %481
        %vm483 = vcmp.eq.f32.partialorder %v467, %v473
        %vm484 = vcmp.eq.f32.partialorder %v468, %v476
        %vm485 = vcmp.eq.f32.partialorder %v469, %v479
        %vm486 = vcmp.eq.f32.partialorder %v470, %v482
        %vm487 = vmand %vm483, %vm466
        %vm488 = vmand %vm484, %vm466
        %vm489 = vmand %vm485, %vm466
        %vm490 = vmand %vm486, %vm466
        %v491 = vsel %vm487, %v465, 12
        %v492 = vsel %vm488, %v465, 12
        %v493 = vsel %vm489, %v465, 12
        %v494 = vsel %vm490, %v465, 12
        %v495 = vsel %vm459, %v491, 2147483647
        %v496 = vand.u32 %v495, 65535
        %v497 = vshra.s32 %v495, 16
        %v498 = vcvt.s32.f32 %v496
        %v499 = vcvt.s32.f32 %v497
        %500 = vmin.xlane.f32.xlu0 %v499
        %v501 = vpop.xlane.xlu0 %500
        %vm502 = vcmp.eq.f32.partialorder %v499, %v501
        %v503 = vsel %vm502, %v498, inf
        %504 = vmin.xlane.f32.xlu0 %v503
        %v505 = vpop.xlane.xlu0 %504
        %v506 = vcvt.f32.s32 %v505
        %v507 = vcvt.f32.s32 %v501
        %v508 = vshll.u32 %v507, 16
        %v509 = vadd.s32 %v508, %v506
        %v510 = vsel %vm459, %v492, 2147483647
        %v511 = vand.u32 %v510, 65535
        %v512 = vshra.s32 %v510, 16
        %v513 = vcvt.s32.f32 %v511
        %v514 = vcvt.s32.f32 %v512
        %515 = vmin.xlane.f32.xlu0 %v514
        %v516 = vpop.xlane.xlu0 %515
        %vm517 = vcmp.eq.f32.partialorder %v514, %v516
        %v518 = vsel %vm517, %v513, inf
        %519 = vmin.xlane.f32.xlu0 %v518
        %v520 = vpop.xlane.xlu0 %519
        %v521 = vcvt.f32.s32 %v520
        %v522 = vcvt.f32.s32 %v516
        %v523 = vshll.u32 %v522, 16
        %v524 = vadd.s32 %v523, %v521
        %v525 = vsel %vm459, %v493, 2147483647
        %v526 = vand.u32 %v525, 65535
        %v527 = vshra.s32 %v525, 16
        %v528 = vcvt.s32.f32 %v526
        %v529 = vcvt.s32.f32 %v527
        %530 = vmin.xlane.f32.xlu0 %v529
        %v531 = vpop.xlane.xlu0 %530
        %vm532 = vcmp.eq.f32.partialorder %v529, %v531
        %v533 = vsel %vm532, %v528, inf
        %534 = vmin.xlane.f32.xlu0 %v533
        %v535 = vpop.xlane.xlu0 %534
        %v536 = vcvt.f32.s32 %v535
        %v537 = vcvt.f32.s32 %v531
        %v538 = vshll.u32 %v537, 16
        %v539 = vadd.s32 %v538, %v536
        %v540 = vsel %vm459, %v494, 2147483647
        %v541 = vand.u32 %v540, 65535
        %v542 = vshra.s32 %v540, 16
        %v543 = vcvt.s32.f32 %v541
        %v544 = vcvt.s32.f32 %v542
        %545 = vmin.xlane.f32.xlu0 %v544
        %v546 = vpop.xlane.xlu0 %545
        %vm547 = vcmp.eq.f32.partialorder %v544, %v546
        %v548 = vsel %vm547, %v543, inf
        %549 = vmin.xlane.f32.xlu0 %v548
        %v550 = vpop.xlane.xlu0 %549
        %v551 = vcvt.f32.s32 %v550
        %v552 = vcvt.f32.s32 %v546
        %v553 = vshll.u32 %v552, 16
        %v554 = vadd.s32 %v553, %v551
        %vm555 = vcmask 7168
        %556 = vst.msk [vmem:[%s404] sm:$0xff] %vm555, %v509
        %557 = vst.msk [vmem:[%s404 + $0x8] sm:$0xff] %vm555, %v524
        %558 = vst.msk [vmem:[%s404 + $0x10] sm:$0xff] %vm555, %v539
        %559 = vst.msk [vmem:[%s404 + $0x18] sm:$0xff] %vm555, %v554
        %s560 = smul.u32 %s413, 128
        %s561 = sld [smem:[#allocation3 + %s560]]
        %s562 = sadd.s32 %s560, 1
        %s563 = sld [smem:[#allocation3 + %s562]]
        %vm564 = vcmp.lt.s32.totalorder %v465, 0
        %v565 = vsub.s32 0, %v465
        %v566 = vsel %vm564, %v565, %v465
        %v567 = vshrl.u32 %v566, 1
        %v568 = vand.u32 %v566, 1
        %v569 = vsub.s32 0, %v568
        %v570 = vsel %vm564, %v569, %v568
        %vm571 = vcmp.ne.s32.totalorder %v570, 0
        %vm572 = vcmp.lt.s32.totalorder %v570, 0
        %vm573 = vmand %vm572, %vm571
        %v574 = vadd.s32 %v570, 2
        %v575 = vsel %vm573, %v574, %v570
        %vm576 = vcmp.eq.s32.totalorder %v575, 0
        %v577 = vstv %s563
        %v578 = vstv %s561
        %v579 = vsel %vm576, %v577, %v578
        %s580 = sadd.s32 %s413, 1
        %s581 = smul.u32 %s580, 128
        %s582 = sld [smem:[#allocation3 + %s581]]
        %s583 = sadd.s32 %s581, 1
        %s584 = sld [smem:[#allocation3 + %s583]]
        %v585 = vstv %s584
        %v586 = vstv %s582
        %v587 = vsel %vm576, %v585, %v586
        %v588 = vld [vmem:[%s382] sm:$0xff]
        %v589 = vld [vmem:[%s382 + $0x8] sm:$0xff]
        %v590 = vld [vmem:[%s382 + $0x10] sm:$0xff]
        %v591 = vld [vmem:[%s382 + $0x18] sm:$0xff]
        %v592 = vmul.f32 %v588, 0.5
        %v593 = vmul.f32 %v589, 0.5
        %v594 = vmul.f32 %v590, 0.5
        %v595 = vmul.f32 %v591, 0.5
        %600 = vrot.lane.b32.xlu0 %v592, 126
        %v601 = vpop.permute.xlu0 %600
        %602 = vrot.lane.b32.xlu0 %v593, 126
        %v603 = vpop.permute.xlu0 %602
        %604 = vrot.lane.b32.xlu0 %v594, 126
        %v605 = vpop.permute.xlu0 %604
        %606 = vrot.lane.b32.xlu0 %v595, 126
        %v607 = vpop.permute.xlu0 %606
        %v612 = vsub.f32 %v588, %v601
        %v613 = vsub.f32 %v589, %v603
        %v614 = vsub.f32 %v590, %v605
        %v615 = vsub.f32 %v591, %v607
        %v616 = vadd.f32 %v588, %v601
        %v617 = vadd.f32 %v589, %v603
        %v618 = vadd.f32 %v590, %v605
        %v619 = vadd.f32 %v591, %v607
        %624 = vrot.lane.b32.xlu0 %v616, 2
        %v625 = vpop.permute.xlu0 %624
        %626 = vrot.lane.b32.xlu0 %v617, 2
        %v627 = vpop.permute.xlu0 %626
        %628 = vrot.lane.b32.xlu0 %v618, 2
        %v629 = vpop.permute.xlu0 %628
        %630 = vrot.lane.b32.xlu0 %v619, 2
        %v631 = vpop.permute.xlu0 %630
        %vm636 = vcmask 15360
        %v637 = vsel %vm636, %v612, %v625
        %v638 = vsel %vm636, %v613, %v627
        %v639 = vsel %vm636, %v614, %v629
        %v640 = vsel %vm636, %v615, %v631
        %v641 = vperm.slane %v579, 0
        %v642 = vperm.slane %v587, 0
        %v643 = vmul.f32 %v637, %v641
        %v644 = vmul.f32 %v638, %v641
        %v645 = vmul.f32 %v639, %v642
        %v646 = vmul.f32 %v640, %v642
        %vm647 = vcmask 31744
        %648 = vst.msk [vmem:[%s411] sm:$0xff] %vm647, %v643
        %649 = vst.msk [vmem:[%s411 + $0x8] sm:$0xff] %vm647, %v644
        %650 = vst.msk [vmem:[%s411 + $0x20] sm:$0xff] %vm647, %v645
        %651 = vst.msk [vmem:[%s411 + $0x28] sm:$0xff] %vm647, %v646
        %v652 = vld [vmem:[%s389] sm:$0xff]
        %v653 = vld [vmem:[%s389 + $0x8] sm:$0xff]
        %v654 = vld [vmem:[%s389 + $0x10] sm:$0xff]
        %v655 = vld [vmem:[%s389 + $0x18] sm:$0xff]
        %v656 = vmul.f32 %v652, 0.5
        %v657 = vmul.f32 %v653, 0.5
        %v658 = vmul.f32 %v654, 0.5
        %v659 = vmul.f32 %v655, 0.5
        %664 = vrot.lane.b32.xlu0 %v656, 126
        %v665 = vpop.permute.xlu0 %664
        %666 = vrot.lane.b32.xlu0 %v657, 126
        %v667 = vpop.permute.xlu0 %666
        %668 = vrot.lane.b32.xlu0 %v658, 126
        %v669 = vpop.permute.xlu0 %668
        %670 = vrot.lane.b32.xlu0 %v659, 126
        %v671 = vpop.permute.xlu0 %670
        %v676 = vsub.f32 %v652, %v665
        %v677 = vsub.f32 %v653, %v667
        %v678 = vsub.f32 %v654, %v669
        %v679 = vsub.f32 %v655, %v671
        %v680 = vadd.f32 %v652, %v665
        %v681 = vadd.f32 %v653, %v667
        %v682 = vadd.f32 %v654, %v669
        %v683 = vadd.f32 %v655, %v671
        %688 = vrot.lane.b32.xlu0 %v680, 2
        %v689 = vpop.permute.xlu0 %688
        %690 = vrot.lane.b32.xlu0 %v681, 2
        %v691 = vpop.permute.xlu0 %690
        %692 = vrot.lane.b32.xlu0 %v682, 2
        %v693 = vpop.permute.xlu0 %692
        %694 = vrot.lane.b32.xlu0 %v683, 2
        %v695 = vpop.permute.xlu0 %694
        %v700 = vsel %vm636, %v676, %v689
        %v701 = vsel %vm636, %v677, %v691
        %v702 = vsel %vm636, %v678, %v693
        %v703 = vsel %vm636, %v679, %v695
        %v704 = vmul.f32 %v700, %v641
        %v705 = vmul.f32 %v701, %v641
        %v706 = vmul.f32 %v702, %v642
        %v707 = vmul.f32 %v703, %v642
        %708 = vst.msk [vmem:[%s411 + $0x10] sm:$0xff] %vm647, %v704
        %709 = vst.msk [vmem:[%s411 + $0x18] sm:$0xff] %vm647, %v705
        %710 = vst.msk [vmem:[%s411 + $0x30] sm:$0xff] %vm647, %v706
        %711 = vst.msk [vmem:[%s411 + $0x38] sm:$0xff] %vm647, %v707
        %s712 = sand.u32 %s143, 1
        %s713 = scalar_lea.sflag [#allocation5], %s712
        %s714 = sand.u32 %s143, 1
        %s715 = smul.addr %s714, 32
        %s716 = scalar_lea.vmem [#allocation4], %s715
        %s717 = smul.u32 2, %s31
        %p718 = scmp.lt.s32.totalorder %s717, 3
        %s719 = scalar_select %p718, %s717, 3
        %s720 = smul.addr %s719, 2
        %s721 = smul.addr %s720, 8
        %s722 = scalar_lea.vmem %s6, %s721
        %s723 = smul.u32 2, %s31
        %p724 = scmp.lt.s32.totalorder %s723, 3
        %s725 = scalar_select %p724, %s723, 3
        %s726 = smul.addr %s725, 2
        %s727 = smul.addr %s726, 8
        %s728 = scalar_lea.vmem %s7, %s727
        %s729 = smul.u32 2, %s31
        %p730 = scmp.lt.s32.totalorder %s729, 3
        %s731 = scalar_select %p730, %s729, 3
        %s732 = smul.addr %s731, 4
        %s733 = smul.addr %s732, 8
        %s734 = scalar_lea.vmem %s8, %s733
        // Predicated region
        $region37: #{tpu_custom_call.1} parent=35 // pred_check
          %p735 = pneg %p153
        $region38: #{tpu_custom_call.1} parent=35 // pred_check_branch
          %737 = sbr.rel (%p735) target = $region40
        $region39: #{tpu_custom_call.1} parent=35 // pred_region
          %s738 = smul.u32 2, %s31
          %740 = vsyncadd %s713, 0
          %s741 = smul.addr %s738, 2
          %s742 = smul.addr %s741, 8
          %s743 = scalar_lea.hbm %s5, %s742
          %s744 = sshll.u32 %s716, 4
          %s745 = int_to_ptr.vmem [resolvable:$true] %s744
          %s746 = sshll.u32 %s743, 4
          %s747 = int_to_ptr.hbm [resolvable:$true] %s746
          %752 = dma.vmem_to_hbm [thread:$0]  %s745, 512, %s747, %s713, 128, 128, 8
        $region40: #{tpu_custom_call.1} parent=35 // pred_fallthru
          _
        // Predicated region
        $region41: #{tpu_custom_call.1} parent=35 // pred_check
          %p753 = pneg %p179
        $region42: #{tpu_custom_call.1} parent=35 // pred_check_branch
          %755 = sbr.rel (%p753) target = $region44
        $region43: #{tpu_custom_call.1} parent=35 // pred_region
          %s756 = smul.u32 2, %s31
        $region44: #{tpu_custom_call.1} parent=35 // pred_fallthru
          _
        // Predicated region
        $region45: #{tpu_custom_call.1} parent=35 // pred_check
          %p757 = pneg %p205
        $region46: #{tpu_custom_call.1} parent=35 // pred_check_branch
          %759 = sbr.rel (%p757) target = $region48
        $region47: #{tpu_custom_call.1} parent=35 // pred_region
          %s760 = smul.u32 2, %s31
        $region48: #{tpu_custom_call.1} parent=35 // pred_fallthru
          _
        // Predicated region
        $region49: #{tpu_custom_call.1} parent=35 // pred_check
          %p761 = pneg %p231
        $region50: #{tpu_custom_call.1} parent=35 // pred_check_branch
          %763 = sbr.rel (%p761) target = $region52
        $region51: #{tpu_custom_call.1} parent=35 // pred_region
          %s764 = smul.u32 2, %s31
        $region52: #{tpu_custom_call.1} parent=35 // pred_fallthru
          _
      $region36: #{tpu_custom_call.1} parent=5 // pred_fallthru
        _
      %p765 = scmp.le.s32.totalorder 2, %s26
      // Predicated region
      $region53: #{tpu_custom_call.1} parent=5 // pred_check
        %p766 = pneg %p765
      $region54: #{tpu_custom_call.1} parent=5 // pred_check_branch
        %768 = sbr.rel (%p766) target = $region56
      $region55: #{tpu_custom_call.1} parent=5 // pred_region
        %s769 = ssub.s32 %s26, 2
        // Predicated region
        $region57: #{tpu_custom_call.1} parent=55 // pred_check
          %p770 = pneg %p159
        $region58: #{tpu_custom_call.1} parent=55 // pred_check_branch
          %772 = sbr.rel (%p770) target = $region60
        $region59: #{tpu_custom_call.1} parent=55 // pred_region
          %s773 = sand.u32 %s144, 1
          %s774 = scalar_lea.sflag [#allocation5], %s773
          %s775 = sand.u32 %s144, 1
          %s776 = smul.addr %s775, 32
          %s777 = scalar_lea.vmem [#allocation4], %s776
          %779 = dma.done %s774, 512
        $region60: #{tpu_custom_call.1} parent=55 // pred_fallthru
          _
        // Predicated region
        $region61: #{tpu_custom_call.1} parent=55 // pred_check
          %p780 = pneg %p185
        $region62: #{tpu_custom_call.1} parent=55 // pred_check_branch
          %782 = sbr.rel (%p780) target = $region64
        $region63: #{tpu_custom_call.1} parent=55 // pred_region
          %s783 = smul.u32 2, %s32
          %p784 = scmp.lt.s32.totalorder %s783, 3
          %s785 = scalar_select %p784, %s783, 3
          %s786 = smul.addr %s785, 2
          %s787 = smul.addr %s786, 8
          %s788 = scalar_lea.vmem %s6, %s787
        $region64: #{tpu_custom_call.1} parent=55 // pred_fallthru
          _
        // Predicated region
        $region65: #{tpu_custom_call.1} parent=55 // pred_check
          %p789 = pneg %p211
        $region66: #{tpu_custom_call.1} parent=55 // pred_check_branch
          %791 = sbr.rel (%p789) target = $region68
        $region67: #{tpu_custom_call.1} parent=55 // pred_region
          %s792 = smul.u32 2, %s32
          %p793 = scmp.lt.s32.totalorder %s792, 3
          %s794 = scalar_select %p793, %s792, 3
          %s795 = smul.addr %s794, 2
          %s796 = smul.addr %s795, 8
          %s797 = scalar_lea.vmem %s7, %s796
        $region68: #{tpu_custom_call.1} parent=55 // pred_fallthru
          _
        // Predicated region
        $region69: #{tpu_custom_call.1} parent=55 // pred_check
          %p798 = pneg %p237
        $region70: #{tpu_custom_call.1} parent=55 // pred_check_branch
          %800 = sbr.rel (%p798) target = $region72
        $region71: #{tpu_custom_call.1} parent=55 // pred_region
          %s801 = smul.u32 2, %s32
          %p802 = scmp.lt.s32.totalorder %s801, 3
          %s803 = scalar_select %p802, %s801, 3
          %s804 = smul.addr %s803, 4
          %s805 = smul.addr %s804, 8
          %s806 = scalar_lea.vmem %s8, %s805
        $region72: #{tpu_custom_call.1} parent=55 // pred_fallthru
          _
      $region56: #{tpu_custom_call.1} parent=5 // pred_fallthru
        _
    $region6: #{tpu_custom_call.1} parent=1 // loop_footer
      %s30 = sadd.s32 1, %s26
    $region7: #{tpu_custom_call.1} parent=1 // loop_footer_branch
      %25 = sbr.rel target = $region3
    $region8: #{tpu_custom_call.1} parent=1 // loop_exit
      _
    %807 = vsyncpa [#allocation5], 1
    %s808 = scalar_lea.sflag [#allocation5], 1
    %809 = vsyncpa %s808, 1

</llo_original>
